<compile_context>
chip_gen: v7x
topology: tpu7x:2x2x1
jax: 0.10.0
libtpu: 0.0.40
codegen_flags: <defaults>
</compile_context>

<pallas_src>
import jax
import jax.numpy as jnp
from jax import lax
from jax.experimental import pallas as pl
from jax.experimental.pallas import tpu as pltpu


# ----------------------------------------------------------------------------
# Pallas kernel (channel-major: [C, TILE_N] tiles)
# ----------------------------------------------------------------------------
def _make_fp_kernel(num_layers, s_idx_bits):
    """Kernel for `num_layers` folded (conv+bn) MLP layers; S indexed in
    `s_idx_bits` low mantissa bits of the distance keys."""

    def kernel(xyz1_ref, xyz2_ref, p1_ref, w0a_ref, w0bp2_ref, b0_ref, *args):
        # args = (w1, b1, w2, b2, ..., out_ref)
        out_ref = args[-1]
        wb = args[:-1]

        xyz1 = xyz1_ref[...]            # f32 [3, TN]
        xyz2 = xyz2_ref[...]            # f32 [S, 3]
        S = xyz2.shape[0]
        TN = xyz1.shape[1]

        # squared pairwise distance [S, TN] -- pure VPU broadcast/sub/sq/add,
        # non-negative by construction (no |a|^2+|b|^2-2ab cancellation).
        diff = xyz2[:, 0:1] - xyz1[0:1, :]                      # [S,1]-[1,TN]
        dist = diff * diff
        for c in range(1, 3):
            diff = xyz2[:, c:c + 1] - xyz1[c:c + 1, :]
            dist = dist + diff * diff

        iota = lax.broadcasted_iota(jnp.int32, (S, TN), 0)      # neighbour idx

        # Pack the neighbour index into the low mantissa bits of the (>= 0)
        # distance: one float min per neighbour yields both dist and argmin
        # (non-negative f32 orders identically to its bits-as-int).  Clamp to
        # 1e-12 first so keys are never denormal; exact ties then break to the
        # lowest index, matching a stable sort.
        idx_mask = jnp.int32((1 << s_idx_bits) - 1)
        inv_mask = jnp.int32(-(1 << s_idx_bits))
        dist = jnp.maximum(dist, jnp.float32(1e-12))
        keyf = pltpu.bitcast(
            (pltpu.bitcast(dist, jnp.int32) & inv_mask) | iota, jnp.float32)

        BIGF = jnp.float32(3.0e38)
        wacc = jnp.zeros((S, TN), jnp.float32)
        norm = jnp.zeros((1, TN), jnp.float32)
        for _ in range(3):
            kmin = jnp.min(keyf, axis=0, keepdims=True)          # [1, TN]
            kbits = pltpu.bitcast(kmin, jnp.int32)
            ik = kbits & idx_mask                                # [1, TN]
            dk = pltpu.bitcast(kbits & inv_mask, jnp.float32)    # [1, TN] >= 0
            sel = iota == ik                                     # [S, TN]
            rk = pl.reciprocal(dk + 1e-8, approx=True)           # EUP
            wacc = wacc + sel.astype(jnp.float32) * rk
            norm = norm + rk
            keyf = jnp.where(sel, BIGF, keyf)
        # single inverse-norm (EUP) then multiply; bf16 for the MXU pass below.
        wmat = (wacc * pl.reciprocal(norm, approx=True)).astype(jnp.bfloat16)

        # layer 0 with the interpolation matmul folded in:
        #   h = W0a @ p1 + (W0b @ P2) @ Wmat + b0     (bf16 operands, f32 acc)
        h = (jnp.dot(w0a_ref[...], p1_ref[...],
                     preferred_element_type=jnp.float32)
             + jnp.dot(w0bp2_ref[...], wmat,
                       preferred_element_type=jnp.float32)
             + b0_ref[...])
        h = jnp.maximum(h, 0.0)

        # remaining shared-MLP layers: (1x1 conv + folded BN) + ReLU
        for i in range(num_layers - 1):
            w = wb[2 * i][...]          # bf16 [Cout, Cin]
            b = wb[2 * i + 1][...]      # f32  [Cout, 1]
            h = jnp.dot(w, h.astype(jnp.bfloat16),
                        preferred_element_type=jnp.float32) + b
            h = jnp.maximum(h, 0.0)

        out_ref[...] = h.astype(out_ref.dtype)

    return kernel


# ----------------------------------------------------------------------------
# Parameter init (deterministic, mirrors nn.Conv1d + nn.BatchNorm1d shapes)
# ----------------------------------------------------------------------------
def init_params(key, in_channel, mlp):
    params = []
    last = in_channel
    for out_channel in mlp:
        key, k1, k2, k3, k4, k5, k6 = jax.random.split(key, 7)
        bound = 1.0 / (last ** 0.5)
        params.append(dict(
            conv_w=jax.random.uniform(k1, (out_channel, last), jnp.float32,
                                      -bound, bound),          # [out, in] (k=1)
            conv_b=jax.random.uniform(k2, (out_channel,), jnp.float32,
                                      -bound, bound),
            bn_gamma=jax.random.uniform(k3, (out_channel,), jnp.float32,
                                        0.8, 1.2),
            bn_beta=jax.random.uniform(k4, (out_channel,), jnp.float32,
                                       -0.1, 0.1),
            bn_mean=jax.random.uniform(k5, (out_channel,), jnp.float32,
                                       -0.1, 0.1),
            bn_var=jax.random.uniform(k6, (out_channel,), jnp.float32,
                                      0.5, 1.5),
        ))
        last = out_channel
    return params


def _fold_params(params, eps=1e-5):
    """Fold eval-mode BN into the 1x1 conv: y = relu(W_eff @ x + b_eff)."""
    folded = []
    for p in params:
        scale = p["bn_gamma"] / jnp.sqrt(p["bn_var"] + eps)            # [out]
        w_eff = p["conv_w"] * scale[:, None]                           # [out, in]
        b_eff = (p["conv_b"] - p["bn_mean"]) * scale + p["bn_beta"]    # [out]
        folded.append((w_eff, b_eff[:, None]))                         # [out,1]
    return folded


# ----------------------------------------------------------------------------
# Tile / VMEM budgeting (feedback #2 and #8)
# ----------------------------------------------------------------------------
def _round_up(x, m):
    return -(-x // m) * m


def _estimate_vmem_bytes(tile_n, d1, s, widths):
    c0, d_out = widths[0], widths[-1]
    # streamed, double-buffered tiles: xyz1(f32) + points1(bf16) + out(f32)
    stream = 2 * tile_n * (3 * 4 + d1 * 2 + d_out * 4)
    # residents (per-batch xyz2 / W0b@P2, and the folded weights), 2 buffers
    resident = 2 * (s * 3 * 4 + c0 * s * 2 + c0 * d1 * 2 + c0 * 4)
    prev = c0
    for w in widths[1:]:
        resident += 2 * (w * prev * 2 + w * 4)
        prev = w
    # in-kernel live intermediates: dist/keys/wacc [S,TN] f32 + h/acc [C,TN]
    cmax = max(widths)
    interm = tile_n * (3 * s * 4 + 2 * cmax * 4) + (64 << 10)
    return stream + resident + interm


def _pick_tile_and_vmem(n, d1, s, widths, tile_n=None, budget_bytes=24 << 20):
    n_cap = _round_up(max(n, 1), 128)
    if tile_n is None:
        tile_n = 128
        for t in (2048, 1024, 512, 256, 128):
            t = min(t, n_cap)
            if _estimate_vmem_bytes(t, d1, s, widths) <= budget_bytes:
                tile_n = t
                break
    est = _estimate_vmem_bytes(tile_n, d1, s, widths)
    vmem_limit = int(min(max(est * 5 // 4 + (4 << 20), 16 << 20), 100 << 20))
    return tile_n, vmem_limit


# ----------------------------------------------------------------------------
# Wrapper (PyTorch-compatible [B, C, N] in / [B, D', N] out)
# ----------------------------------------------------------------------------
def pointnet_fp_forward(xyz1, xyz2, points1, points2, params, tile_n=None):
    B, _, N = xyz1.shape
    S = xyz2.shape[2]
    assert 3 <= S <= 4096, "kernel implements the S >= 3 three_nn path"
    D1 = points1.shape[1]
    D2 = points2.shape[1]
    assert params[0]["conv_w"].shape[1] == D1 + D2
    widths = [p["conv_w"].shape[0] for p in params]
    C0, D_out = widths[0], widths[-1]

    s_idx_bits = max(1, (S - 1).bit_length())
    tile_n, vmem_limit = _pick_tile_and_vmem(N, D1, S, widths, tile_n)
    n_tiles = pl.cdiv(N, tile_n)

    # only tiny glue transpose: xyz2 -> [B, S, 3]
    xyz2_t = jnp.transpose(xyz2, (0, 2, 1))

    folded = _fold_params(params)
    num_layers = len(folded)
    w0, b0 = folded[0]
    w0a = w0[:, :D1].astype(jnp.bfloat16)                      # [C0, D1]
    # algebraic fusion of the interpolation matmul into layer 0:
    #   W0b @ (P2 @ Wmat) == (W0b @ P2) @ Wmat, precomputed per batch (f32).
    w0bp2 = jnp.einsum("od,bds->bos", w0[:, D1:], points2).astype(jnp.bfloat16)
    flat_wb = []
    for (w, b) in folded[1:]:
        flat_wb += [w.astype(jnp.bfloat16), b]

    # stream points1 as bf16 (dominant HBM stream halved; no per-tile cast)
    points1_bf = points1.astype(jnp.bfloat16)

    def tiled_spec(ch):       # streamed over the N axis (ragged tail masked)
        return pl.BlockSpec((pl.Squeezed(), ch, tile_n), lambda b, n: (b, 0, n))

    def resident_spec(shape2d):   # per-batch, resident across N tiles
        return pl.BlockSpec((pl.Squeezed(),) + shape2d, lambda b, n: (b, 0, 0))

    def shared_spec(shape2d):     # weights, resident across whole grid
        return pl.BlockSpec(shape2d, lambda b, n: (0, 0))

    in_specs = [
        tiled_spec(3),                   # xyz1       [B, 3, N]    f32
        resident_spec((S, 3)),           # xyz2_t     [B, S, 3]    f32
        tiled_spec(D1),                  # points1    [B, D1, N]   bf16
        shared_spec(w0a.shape),          # W0a        [C0, D1]     bf16
        resident_spec((C0, S)),          # W0b @ P2   [B, C0, S]   bf16
        shared_spec(b0.shape),           # b0         [C0, 1]      f32
    ]
    for x in flat_wb:
        in_specs.append(shared_spec(x.shape))

    out = pl.pallas_call(
        _make_fp_kernel(num_layers, s_idx_bits),
        out_shape=jax.ShapeDtypeStruct((B, D_out, N), jnp.float32),
        grid_spec=pltpu.PrefetchScalarGridSpec(
            num_scalar_prefetch=0,
            grid=(B, n_tiles),
            in_specs=in_specs,
            out_specs=tiled_spec(D_out),   # lane-dense over N
        ),
        compiler_params=pltpu.CompilerParams(
            # B "arbitrary" so a megacore split (v7x) lands on the N-tile axis.
            dimension_semantics=("arbitrary", "parallel"),
            vmem_limit_bytes=vmem_limit),
    )(xyz1, xyz2_t, points1_bf, w0a, w0bp2, b0, *flat_wb)

    return out   # [B, D_out, N], PyTorch layout


# ----------------------------------------------------------------------------
# Pure-JAX reference (mirrors the PyTorch path; same bf16 MLP precision)
# ----------------------------------------------------------------------------
def reference_forward(xyz1, xyz2, points1, points2, params):
    x1 = jnp.transpose(xyz1, (0, 2, 1))       # [B, N, 3]
    x2 = jnp.transpose(xyz2, (0, 2, 1))       # [B, S, 3]
    p1 = jnp.transpose(points1, (0, 2, 1))    # [B, N, D1]
    p2 = jnp.transpose(points2, (0, 2, 1))    # [B, S, D2]

    d = (jnp.sum(x1 ** 2, -1)[:, :, None]
         + jnp.sum(x2 ** 2, -1)[:, None, :]
         - 2.0 * jnp.einsum("bnc,bmc->bnm", x1, x2))
    idx = jnp.argsort(d, axis=-1)[:, :, :3]                    # [B, N, 3]
    dist = jnp.take_along_axis(d, idx, axis=-1)
    recip = 1.0 / (dist + 1e-8)
    w = recip / jnp.sum(recip, -1, keepdims=True)              # [B, N, 3]
    gathered = jax.vmap(lambda p, i: p[i])(p2, idx)            # [B, N, 3, D2]
    interp = jnp.sum(gathered * w[..., None], axis=2)          # [B, N, D2]

    h = jnp.concatenate([p1, interp], axis=-1)                 # [B, N, D1+D2]
    for (w_eff, b_eff) in _fold_params(params):
        h = jnp.einsum("bni,oi->bno",
                       h.astype(jnp.bfloat16),
                       w_eff.astype(jnp.bfloat16),
                       preferred_element_type=jnp.float32)
        h = jnp.maximum(h + b_eff[:, 0][None, None, :], 0.0)
    return jnp.transpose(h, (0, 2, 1))                         # [B, D', N]


# ----------------------------------------------------------------------------
if __name__ == "__main__":
    # --- main case: multi-tile (B, N//TILE_N) = (2, 2) grid -----------------
    B, N, S = 2, 256, 8
    D1, D2 = 16, 16
    mlp = [32, 16]

    key = jax.random.PRNGKey(0)
    k_xyz1, k_xyz2, k_p1, k_p2, k_param, k2 = jax.random.split(key, 6)

    xyz1 = jax.random.normal(k_xyz1, (B, 3, N), jnp.float32)
    xyz2 = jax.random.normal(k_xyz2, (B, 3, S), jnp.float32)
    points1 = jax.random.normal(k_p1, (B, D1, N), jnp.float32)
    points2 = jax.random.normal(k_p2, (B, D2, S), jnp.float32)
    params = init_params(k_param, D1 + D2, mlp)

    out = pointnet_fp_forward(xyz1, xyz2, points1, points2, params, tile_n=128)
    out = jax.block_until_ready(out)
    ref = reference_forward(xyz1, xyz2, points1, points2, params)
    assert out.shape == (B, mlp[-1], N), out.shape
    max_err = float(jnp.max(jnp.abs(out - ref)))
    # bf16 MXU operands (incl. bf16 interpolation weights) set the tolerance
    assert jnp.allclose(out, ref, atol=3e-2, rtol=3e-2), max_err

    # --- ragged-N case: pl.cdiv grid with masked last tile, auto tile pick --
    B2, N2, S2, D1b, D2b = 1, 200, 6, 8, 8
    mlp2 = [16]
    ka, kb, kc, kd, ke = jax.random.split(k2, 5)
    xyz1b = jax.random.normal(ka, (B2, 3, N2), jnp.float32)
    xyz2b = jax.random.normal(kb, (B2, 3, S2), jnp.float32)
    p1b = jax.random.normal(kc, (B2, D1b, N2), jnp.float32)
    p2b = jax.random.normal(kd, (B2, D2b, S2), jnp.float32)
    params2 = init_params(ke, D1b + D2b, mlp2)

    out2 = pointnet_fp_forward(xyz1b, xyz2b, p1b, p2b, params2)
    out2 = jax.block_until_ready(out2)
    ref2 = reference_forward(xyz1b, xyz2b, p1b, p2b, params2)
    assert out2.shape == (B2, mlp2[-1], N2), out2.shape
    max_err2 = float(jnp.max(jnp.abs(out2 - ref2)))
    assert jnp.allclose(out2, ref2, atol=3e-2, rtol=3e-2), max_err2

    print("KERNEL_OK")
</pallas_src>

<mosaic_0001>
module attributes {stable_mosaic.version = 11 : i64} {
  func.func @kernel(%arg0: i32, %arg1: i32, %arg2: memref<1x3x128xf32, #tpu.memory_space<vmem>>, %arg3: memref<1x8x3xf32, #tpu.memory_space<vmem>>, %arg4: memref<1x16x128xbf16, #tpu.memory_space<vmem>>, %arg5: memref<32x16xbf16, #tpu.memory_space<vmem>>, %arg6: memref<1x32x8xbf16, #tpu.memory_space<vmem>>, %arg7: memref<32x1xf32, #tpu.memory_space<vmem>>, %arg8: memref<16x32xbf16, #tpu.memory_space<vmem>>, %arg9: memref<16x1xf32, #tpu.memory_space<vmem>>, %arg10: memref<1x16x128xf32, #tpu.memory_space<vmem>>) attributes {dimension_semantics = [#tpu.dimension_semantics<arbitrary>, #tpu.dimension_semantics<parallel>], iteration_bounds = array<i64: 2, 2>, scalar_prefetch = 0 : i64, scratch_operands = 0 : i64, tpu.core_type = #tpu.core_type<tc>, window_params = [{transform_indices = @transform_0, window_bounds = array<i64: 1, 3, 128>}, {transform_indices = @transform_1, window_bounds = array<i64: 1, 8, 3>}, {transform_indices = @transform_2, window_bounds = array<i64: 1, 16, 128>}, {pipeline_mode = #tpu.pipeline_mode<synchronous>, transform_indices = @transform_3, window_bounds = array<i64: 32, 16>}, {transform_indices = @transform_4, window_bounds = array<i64: 1, 32, 8>}, {pipeline_mode = #tpu.pipeline_mode<synchronous>, transform_indices = @transform_5, window_bounds = array<i64: 32, 1>}, {pipeline_mode = #tpu.pipeline_mode<synchronous>, transform_indices = @transform_6, window_bounds = array<i64: 16, 32>}, {pipeline_mode = #tpu.pipeline_mode<synchronous>, transform_indices = @transform_7, window_bounds = array<i64: 16, 1>}, {transform_indices = @transform_8, window_bounds = array<i64: 1, 16, 128>}]} {
    %c0 = arith.constant 0 : index
    %c0_0 = arith.constant 0 : index
    %c0_1 = arith.constant 0 : index
    %0 = vector.load %arg2[%c0, %c0_0, %c0_1] : memref<1x3x128xf32, #tpu.memory_space<vmem>>, vector<1x3x128xf32>
    %1 = vector.shape_cast %0 : vector<1x3x128xf32> to vector<3x128xf32>
    %c0_2 = arith.constant 0 : index
    %c0_3 = arith.constant 0 : index
    %c0_4 = arith.constant 0 : index
    %2 = vector.load %arg3[%c0_2, %c0_3, %c0_4] : memref<1x8x3xf32, #tpu.memory_space<vmem>>, vector<1x8x3xf32>
    %3 = vector.shape_cast %2 : vector<1x8x3xf32> to vector<8x3xf32>
    %4 = vector.extract_strided_slice %3 {offsets = [0, 0], sizes = [8, 1], strides = [1, 1]} : vector<8x3xf32> to vector<8x1xf32>
    %5 = vector.extract_strided_slice %1 {offsets = [0, 0], sizes = [1, 128], strides = [1, 1]} : vector<3x128xf32> to vector<1x128xf32>
    %6 = vector.broadcast %4 : vector<8x1xf32> to vector<8x128xf32>
    %7 = vector.broadcast %5 : vector<1x128xf32> to vector<8x128xf32>
    %8 = arith.subf %6, %7 : vector<8x128xf32>
    %9 = arith.mulf %8, %8 : vector<8x128xf32>
    %10 = vector.extract_strided_slice %3 {offsets = [0, 1], sizes = [8, 1], strides = [1, 1]} : vector<8x3xf32> to vector<8x1xf32>
    %11 = vector.extract_strided_slice %1 {offsets = [1, 0], sizes = [1, 128], strides = [1, 1]} : vector<3x128xf32> to vector<1x128xf32>
    %12 = vector.broadcast %10 : vector<8x1xf32> to vector<8x128xf32>
    %13 = vector.broadcast %11 : vector<1x128xf32> to vector<8x128xf32>
    %14 = arith.subf %12, %13 : vector<8x128xf32>
    %15 = arith.mulf %14, %14 : vector<8x128xf32>
    %16 = arith.addf %9, %15 : vector<8x128xf32>
    %17 = vector.extract_strided_slice %3 {offsets = [0, 2], sizes = [8, 1], strides = [1, 1]} : vector<8x3xf32> to vector<8x1xf32>
    %18 = vector.extract_strided_slice %1 {offsets = [2, 0], sizes = [1, 128], strides = [1, 1]} : vector<3x128xf32> to vector<1x128xf32>
    %19 = vector.broadcast %17 : vector<8x1xf32> to vector<8x128xf32>
    %20 = vector.broadcast %18 : vector<1x128xf32> to vector<8x128xf32>
    %21 = arith.subf %19, %20 : vector<8x128xf32>
    %22 = arith.mulf %21, %21 : vector<8x128xf32>
    %23 = arith.addf %16, %22 : vector<8x128xf32>
    %24 = tpu.iota {dimensions = array<i32: 0>} : vector<8x128xi32>
    %cst = arith.constant 9.99999996E-13 : f32
    %25 = vector.broadcast %cst : f32 to vector<8x128xf32>
    %26 = arith.maximumf %23, %25 : vector<8x128xf32>
    %27 = tpu.bitcast %26 : vector<8x128xf32> -> vector<8x128xi32>
    %c-8_i32 = arith.constant -8 : i32
    %28 = vector.broadcast %c-8_i32 : i32 to vector<8x128xi32>
    %29 = arith.andi %27, %28 : vector<8x128xi32>
    %30 = arith.ori %29, %24 : vector<8x128xi32>
    %31 = tpu.bitcast %30 : vector<8x128xi32> -> vector<8x128xf32>
    %cst_5 = arith.constant 0.000000e+00 : f32
    %32 = vector.broadcast %cst_5 : f32 to vector<8x128xf32>
    %cst_6 = arith.constant 0.000000e+00 : f32
    %33 = vector.broadcast %cst_6 : f32 to vector<1x128xf32>
    %cst_7 = arith.constant dense<0x7F800000> : vector<128xf32>
    %34 = vector.multi_reduction <minimumf>, %31, %cst_7 [0] : vector<8x128xf32> to vector<128xf32>
    %35 = vector.shape_cast %34 : vector<128xf32> to vector<1x128xf32>
    %36 = tpu.bitcast %35 : vector<1x128xf32> -> vector<1x128xi32>
    %c7_i32 = arith.constant 7 : i32
    %37 = vector.broadcast %c7_i32 : i32 to vector<1x128xi32>
    %38 = arith.andi %36, %37 : vector<1x128xi32>
    %c-8_i32_8 = arith.constant -8 : i32
    %39 = vector.broadcast %c-8_i32_8 : i32 to vector<1x128xi32>
    %40 = arith.andi %36, %39 : vector<1x128xi32>
    %41 = tpu.bitcast %40 : vector<1x128xi32> -> vector<1x128xf32>
    %42 = vector.broadcast %38 : vector<1x128xi32> to vector<8x128xi32>
    %43 = arith.cmpi eq, %24, %42 : vector<8x128xi32>
    %cst_9 = arith.constant 9.99999993E-9 : f32
    %44 = vector.broadcast %cst_9 : f32 to vector<1x128xf32>
    %45 = arith.addf %41, %44 : vector<1x128xf32>
    %46 = tpu.reciprocal %45 {approx = true} : vector<1x128xf32> -> vector<1x128xf32>
    %47 = arith.extui %43 : vector<8x128xi1> to vector<8x128xi32>
    %48 = arith.sitofp %47 : vector<8x128xi32> to vector<8x128xf32>
    %49 = vector.broadcast %46 : vector<1x128xf32> to vector<8x128xf32>
    %50 = arith.mulf %48, %49 : vector<8x128xf32>
    %51 = arith.addf %32, %50 : vector<8x128xf32>
    %52 = arith.addf %33, %46 : vector<1x128xf32>
    %cst_10 = arith.constant 3.000000e+38 : f32
    %53 = vector.broadcast %cst_10 : f32 to vector<8x128xf32>
    %54 = arith.select %43, %53, %31 : vector<8x128xi1>, vector<8x128xf32>
    %cst_11 = arith.constant dense<0x7F800000> : vector<128xf32>
    %55 = vector.multi_reduction <minimumf>, %54, %cst_11 [0] : vector<8x128xf32> to vector<128xf32>
    %56 = vector.shape_cast %55 : vector<128xf32> to vector<1x128xf32>
    %57 = tpu.bitcast %56 : vector<1x128xf32> -> vector<1x128xi32>
    %c7_i32_12 = arith.constant 7 : i32
    %58 = vector.broadcast %c7_i32_12 : i32 to vector<1x128xi32>
    %59 = arith.andi %57, %58 : vector<1x128xi32>
    %c-8_i32_13 = arith.constant -8 : i32
    %60 = vector.broadcast %c-8_i32_13 : i32 to vector<1x128xi32>
    %61 = arith.andi %57, %60 : vector<1x128xi32>
    %62 = tpu.bitcast %61 : vector<1x128xi32> -> vector<1x128xf32>
    %63 = vector.broadcast %59 : vector<1x128xi32> to vector<8x128xi32>
    %64 = arith.cmpi eq, %24, %63 : vector<8x128xi32>
    %cst_14 = arith.constant 9.99999993E-9 : f32
    %65 = vector.broadcast %cst_14 : f32 to vector<1x128xf32>
    %66 = arith.addf %62, %65 : vector<1x128xf32>
    %67 = tpu.reciprocal %66 {approx = true} : vector<1x128xf32> -> vector<1x128xf32>
    %68 = arith.extui %64 : vector<8x128xi1> to vector<8x128xi32>
    %69 = arith.sitofp %68 : vector<8x128xi32> to vector<8x128xf32>
    %70 = vector.broadcast %67 : vector<1x128xf32> to vector<8x128xf32>
    %71 = arith.mulf %69, %70 : vector<8x128xf32>
    %72 = arith.addf %51, %71 : vector<8x128xf32>
    %73 = arith.addf %52, %67 : vector<1x128xf32>
    %cst_15 = arith.constant 3.000000e+38 : f32
    %74 = vector.broadcast %cst_15 : f32 to vector<8x128xf32>
    %75 = arith.select %64, %74, %54 : vector<8x128xi1>, vector<8x128xf32>
    %cst_16 = arith.constant dense<0x7F800000> : vector<128xf32>
    %76 = vector.multi_reduction <minimumf>, %75, %cst_16 [0] : vector<8x128xf32> to vector<128xf32>
    %77 = vector.shape_cast %76 : vector<128xf32> to vector<1x128xf32>
    %78 = tpu.bitcast %77 : vector<1x128xf32> -> vector<1x128xi32>
    %c7_i32_17 = arith.constant 7 : i32
    %79 = vector.broadcast %c7_i32_17 : i32 to vector<1x128xi32>
    %80 = arith.andi %78, %79 : vector<1x128xi32>
    %c-8_i32_18 = arith.constant -8 : i32
    %81 = vector.broadcast %c-8_i32_18 : i32 to vector<1x128xi32>
    %82 = arith.andi %78, %81 : vector<1x128xi32>
    %83 = tpu.bitcast %82 : vector<1x128xi32> -> vector<1x128xf32>
    %84 = vector.broadcast %80 : vector<1x128xi32> to vector<8x128xi32>
    %85 = arith.cmpi eq, %24, %84 : vector<8x128xi32>
    %cst_19 = arith.constant 9.99999993E-9 : f32
    %86 = vector.broadcast %cst_19 : f32 to vector<1x128xf32>
    %87 = arith.addf %83, %86 : vector<1x128xf32>
    %88 = tpu.reciprocal %87 {approx = true} : vector<1x128xf32> -> vector<1x128xf32>
    %89 = arith.extui %85 : vector<8x128xi1> to vector<8x128xi32>
    %90 = arith.sitofp %89 : vector<8x128xi32> to vector<8x128xf32>
    %91 = vector.broadcast %88 : vector<1x128xf32> to vector<8x128xf32>
    %92 = arith.mulf %90, %91 : vector<8x128xf32>
    %93 = arith.addf %72, %92 : vector<8x128xf32>
    %94 = arith.addf %73, %88 : vector<1x128xf32>
    %95 = tpu.reciprocal %94 {approx = true} : vector<1x128xf32> -> vector<1x128xf32>
    %96 = vector.broadcast %95 : vector<1x128xf32> to vector<8x128xf32>
    %97 = arith.mulf %93, %96 : vector<8x128xf32>
    %98 = arith.truncf %97 : vector<8x128xf32> to vector<8x128xbf16>
    %c0_20 = arith.constant 0 : index
    %c0_21 = arith.constant 0 : index
    %99 = vector.load %arg5[%c0_20, %c0_21] : memref<32x16xbf16, #tpu.memory_space<vmem>>, vector<32x16xbf16>
    %c0_22 = arith.constant 0 : index
    %c0_23 = arith.constant 0 : index
    %c0_24 = arith.constant 0 : index
    %100 = vector.load %arg4[%c0_22, %c0_23, %c0_24] : memref<1x16x128xbf16, #tpu.memory_space<vmem>>, vector<1x16x128xbf16>
    %101 = vector.shape_cast %100 : vector<1x16x128xbf16> to vector<16x128xbf16>
    %cst_25 = arith.constant dense<0.000000e+00> : vector<32x128xf32>
    %102 = tpu.matmul %99, %101, %cst_25 {dimension_numbers = #tpu.dot_dimension_numbers<[1], [0], [0], [1], [0, 0, 1, 1], [], []>} : vector<32x16xbf16>, vector<16x128xbf16>, vector<32x128xf32> -> vector<32x128xf32>
    %c0_26 = arith.constant 0 : index
    %c0_27 = arith.constant 0 : index
    %c0_28 = arith.constant 0 : index
    %103 = vector.load %arg6[%c0_26, %c0_27, %c0_28] : memref<1x32x8xbf16, #tpu.memory_space<vmem>>, vector<1x32x8xbf16>
    %104 = vector.shape_cast %103 : vector<1x32x8xbf16> to vector<32x8xbf16>
    %cst_29 = arith.constant dense<0.000000e+00> : vector<32x128xf32>
    %105 = tpu.matmul %104, %98, %cst_29 {dimension_numbers = #tpu.dot_dimension_numbers<[1], [0], [0], [1], [0, 0, 1, 1], [], []>} : vector<32x8xbf16>, vector<8x128xbf16>, vector<32x128xf32> -> vector<32x128xf32>
    %106 = arith.addf %102, %105 : vector<32x128xf32>
    %c0_30 = arith.constant 0 : index
    %c0_31 = arith.constant 0 : index
    %107 = vector.load %arg7[%c0_30, %c0_31] : memref<32x1xf32, #tpu.memory_space<vmem>>, vector<32x1xf32>
    %108 = vector.broadcast %107 : vector<32x1xf32> to vector<32x128xf32>
    %109 = arith.addf %106, %108 : vector<32x128xf32>
    %cst_32 = arith.constant 0.000000e+00 : f32
    %110 = vector.broadcast %cst_32 : f32 to vector<32x128xf32>
    %111 = arith.maximumf %109, %110 : vector<32x128xf32>
    %c0_33 = arith.constant 0 : index
    %c0_34 = arith.constant 0 : index
    %112 = vector.load %arg8[%c0_33, %c0_34] : memref<16x32xbf16, #tpu.memory_space<vmem>>, vector<16x32xbf16>
    %c0_35 = arith.constant 0 : index
    %c0_36 = arith.constant 0 : index
    %113 = vector.load %arg9[%c0_35, %c0_36] : memref<16x1xf32, #tpu.memory_space<vmem>>, vector<16x1xf32>
    %114 = arith.truncf %111 : vector<32x128xf32> to vector<32x128xbf16>
    %cst_37 = arith.constant dense<0.000000e+00> : vector<16x128xf32>
    %115 = tpu.matmul %112, %114, %cst_37 {dimension_numbers = #tpu.dot_dimension_numbers<[1], [0], [0], [1], [0, 0, 1, 1], [], []>} : vector<16x32xbf16>, vector<32x128xbf16>, vector<16x128xf32> -> vector<16x128xf32>
    %116 = vector.broadcast %113 : vector<16x1xf32> to vector<16x128xf32>
    %117 = arith.addf %115, %116 : vector<16x128xf32>
    %cst_38 = arith.constant 0.000000e+00 : f32
    %118 = vector.broadcast %cst_38 : f32 to vector<16x128xf32>
    %119 = arith.maximumf %117, %118 : vector<16x128xf32>
    %c0_39 = arith.constant 0 : index
    %c0_40 = arith.constant 0 : index
    %c0_41 = arith.constant 0 : index
    %120 = vector.load %arg10[%c0_39, %c0_40, %c0_41] : memref<1x16x128xf32, #tpu.memory_space<vmem>>, vector<1x16x128xf32>
    %121 = vector.shape_cast %120 : vector<1x16x128xf32> to vector<16x128xf32>
    %122 = vector.shape_cast %119 : vector<16x128xf32> to vector<1x16x128xf32>
    tpu.vector_store %arg10[%c0_39, %c0_40, %c0_41], %122 {strides = array<i32>} : memref<1x16x128xf32, #tpu.memory_space<vmem>>, vector<1x16x128xf32>,
    return
  }
  func.func @transform_0(%arg0: i32, %arg1: i32) -> (i32, i32, i32) {
    %c0_i32 = arith.constant 0 : i32
    %c0_i32_0 = arith.constant 0 : i32
    return %arg0, %c0_i32, %arg1 : i32, i32, i32
  }
  func.func @transform_1(%arg0: i32, %arg1: i32) -> (i32, i32, i32) {
    %c0_i32 = arith.constant 0 : i32
    %c0_i32_0 = arith.constant 0 : i32
    %c0_i32_1 = arith.constant 0 : i32
    return %arg0, %c0_i32, %c0_i32_0 : i32, i32, i32
  }
  func.func @transform_2(%arg0: i32, %arg1: i32) -> (i32, i32, i32) {
    %c0_i32 = arith.constant 0 : i32
    %c0_i32_0 = arith.constant 0 : i32
    return %arg0, %c0_i32, %arg1 : i32, i32, i32
  }
  func.func @transform_3(%arg0: i32, %arg1: i32) -> (i32, i32) {
    %c0_i32 = arith.constant 0 : i32
    %c0_i32_0 = arith.constant 0 : i32
    %c0_i32_1 = arith.constant 0 : i32
    return %c0_i32, %c0_i32_0 : i32, i32
  }
  func.func @transform_4(%arg0: i32, %arg1: i32) -> (i32, i32, i32) {
    %c0_i32 = arith.constant 0 : i32
    %c0_i32_0 = arith.constant 0 : i32
    %c0_i32_1 = arith.constant 0 : i32
    return %arg0, %c0_i32, %c0_i32_0 : i32, i32, i32
  }
  func.func @transform_5(%arg0: i32, %arg1: i32) -> (i32, i32) {
    %c0_i32 = arith.constant 0 : i32
    %c0_i32_0 = arith.constant 0 : i32
    %c0_i32_1 = arith.constant 0 : i32
    return %c0_i32, %c0_i32_0 : i32, i32
  }
  func.func @transform_6(%arg0: i32, %arg1: i32) -> (i32, i32) {
    %c0_i32 = arith.constant 0 : i32
    %c0_i32_0 = arith.constant 0 : i32
    %c0_i32_1 = arith.constant 0 : i32
    return %c0_i32, %c0_i32_0 : i32, i32
  }
  func.func @transform_7(%arg0: i32, %arg1: i32) -> (i32, i32) {
    %c0_i32 = arith.constant 0 : i32
    %c0_i32_0 = arith.constant 0 : i32
    %c0_i32_1 = arith.constant 0 : i32
    return %c0_i32, %c0_i32_0 : i32, i32
  }
  func.func @transform_8(%arg0: i32, %arg1: i32) -> (i32, i32, i32) {
    %c0_i32 = arith.constant 0 : i32
    %c0_i32_0 = arith.constant 0 : i32
    return %arg0, %c0_i32, %arg1 : i32, i32, i32
  }
}

</mosaic_0001>

<llo_original>
// kernel: tpu_custom_call.1
$region0: #{tpu_custom_call.1}
  #allocation0 [shape = 'u32[]', space=smem, size = 0x4, offset = 0x4, fixed_abs, tag = 'smem constant byte address 0x4 - core index']
  #allocation1 [shape = 'u32[144,128]{1,0:T(1,128)}', space=vmem, size = 0x12000, scoped, tag = 'internal scratch']
  %s0 = inlined_call_operand.vmem [shape: f32[2,3,256], index: 0, kind: input, shape index: {}]
  %s1 = inlined_call_operand.vmem [shape: f32[2,8,3], index: 1, kind: input, shape index: {}]
  %s2 = inlined_call_operand.vmem [shape: bf16[2,16,256], index: 2, kind: input, shape index: {}]
  %s3 = inlined_call_operand.vmem [shape: bf16[32,16], index: 3, kind: input, shape index: {}]
  %s4 = inlined_call_operand.vmem [shape: bf16[2,32,8], index: 4, kind: input, shape index: {}]
  %s5 = inlined_call_operand.vmem [shape: f32[32,1], index: 5, kind: input, shape index: {}]
  %s6 = inlined_call_operand.vmem [shape: bf16[16,32], index: 6, kind: input, shape index: {}]
  %s7 = inlined_call_operand.vmem [shape: f32[16,1], index: 7, kind: input, shape index: {}]
  %s8 = inlined_call_operand.hbm [shape: f32[2,16,256], index: 8, kind: output, shape index: {}]
  %s9 = sld [smem:[#allocation0]]
  $region106: #{tpu_custom_call.1} parent=0
    _
  %s11 = ssub.s32 1, %s9
  %s12 = scalar_select 0, %s11, %s9
  $region1: #{tpu_custom_call.1} parent=0
    #allocation2 [shape = 'u8[8192]{0}', space=vmem, size = 0x2000, scoped, tag = 'input window, operand 2']
    #allocation3 [shape = 'u8[16384]{0}', space=vmem, size = 0x4000, scoped, tag = 'output window, operand 0']
    #allocation4 [shape = 's32[2]{0}', space=sflag, size = 0x8, scoped, tag = 'scoped memory for tpu_custom_call.1']
    %13 = vsyncpa [#allocation4], 0
    %s14 = scalar_lea.sflag [#allocation4], 1
    %15 = vsyncpa %s14, 0
    loop: start=0, step=1, limit=6
    $region2: #{tpu_custom_call.1} parent=1 // loop_pre_header
      _
    $region3: #{tpu_custom_call.1} parent=1 // loop_header
      %s17 = sphi 0, %s21
      %p18 = scmp.ge.s32.totalorder %s17, 6
      %s24 = sphi 0, %s36
      %s25 = sphi 0, %s32
      %s26 = sphi 0, %s24
      %s27 = sphi 0, %s25
      %s28 = sphi 0, %s26
      %s29 = sphi 0, %s27
      %s41 = sphi 0, %s43
      %s44 = sphi 0, %s41
      %s45 = sphi 0, %s44
      %s61 = sphi 0, %s45
      %s67 = sphi 0, %s69
      %s70 = sphi 0, %s67
      %s71 = sphi 0, %s70
      %s87 = sphi 0, %s71
      %s95 = sphi 0, %s97
      %s98 = sphi 0, %s95
      %s99 = sphi 0, %s98
      %s115 = sphi 0, %s99
      %s119 = sphi 0, %s119
      %s121 = sphi 0, %s119
      %s122 = sphi 0, %s121
      %s136 = sphi 0, %s122
      %s142 = sphi 0, %s144
      %s145 = sphi 0, %s142
      %s146 = sphi 0, %s145
      %s162 = sphi 0, %s146
      %s166 = sphi 0, %s166
      %s168 = sphi 0, %s166
      %s169 = sphi 0, %s168
      %s183 = sphi 0, %s169
      %s187 = sphi 0, %s187
      %s189 = sphi 0, %s187
      %s190 = sphi 0, %s189
      %s204 = sphi 0, %s190
      %s208 = sphi 0, %s208
      %s210 = sphi 0, %s208
      %s211 = sphi 0, %s210
      %s225 = sphi 0, %s211
      %s233 = sphi 0, %s235
      %s236 = sphi 0, %s233
      %s237 = sphi 0, %s236
      %s253 = sphi 0, %s237
    $region4: #{tpu_custom_call.1} parent=1 // loop_header_branch
      %20 = sbr.rel (%p18) target = $region8
    $region5: #{tpu_custom_call.1} parent=1 // loop_body
      %s22 = ssub.s32 %s17, 1
      %s23 = ssub.s32 %s17, 2
      %s30 = sadd.s32 1, %s25
      %p31 = scmp.ge.s32.totalorder %s30, 2
      %s32 = scalar_select %p31, 0, %s30
      %s33 = sadd.s32 1, %s24
      %s34 = scalar_select %p31, %s33, %s24
      %p35 = scmp.ge.s32.totalorder %s34, 2
      %s36 = scalar_select %p35, 0, %s34
      %s37 = ssub.s32 %s24, %s36
      %s38 = ssub.s32 %s25, %s32
      %s39 = sor.u32 %s37, %s38
      %p40 = scmp.eq.s32.totalorder %s39, 0
      %s42 = sadd.s32 %s41, 1
      %s43 = scalar_select %p40, %s41, %s42
      %p46 = pneg %p40
      %p47 = scmp.eq.s32.totalorder %s17, 3
      %p48 = por %p46, %p47
      %p49 = scmp.ne.s32.totalorder %s41, %s44
      %p50 = scmp.eq.s32.totalorder %s17, 0
      %p51 = por %p49, %p50
      %p52 = scmp.ne.s32.totalorder %s41, %s44
      %p53 = scmp.eq.s32.totalorder %s22, 3
      %p54 = por %p52, %p53
      %p55 = scmp.ne.s32.totalorder %s44, %s45
      %p56 = scmp.eq.s32.totalorder %s22, 0
      %p57 = por %p55, %p56
      %p58 = scmp.ne.s32.totalorder %s44, %s45
      %p59 = scmp.eq.s32.totalorder %s23, 3
      %p60 = por %p58, %p59
      %p62 = scmp.ne.s32.totalorder %s45, %s61
      %p63 = scmp.eq.s32.totalorder %s23, 0
      %p64 = por %p62, %p63
      %s65 = ssub.s32 %s24, %s36
      %p66 = scmp.eq.s32.totalorder %s65, 0
      %s68 = sadd.s32 %s67, 1
      %s69 = scalar_select %p66, %s67, %s68
      %p72 = pneg %p66
      %p73 = scmp.eq.s32.totalorder %s17, 3
      %p74 = por %p72, %p73
      %p75 = scmp.ne.s32.totalorder %s67, %s70
      %p76 = scmp.eq.s32.totalorder %s17, 0
      %p77 = por %p75, %p76
      %p78 = scmp.ne.s32.totalorder %s67, %s70
      %p79 = scmp.eq.s32.totalorder %s22, 3
      %p80 = por %p78, %p79
      %p81 = scmp.ne.s32.totalorder %s70, %s71
      %p82 = scmp.eq.s32.totalorder %s22, 0
      %p83 = por %p81, %p82
      %p84 = scmp.ne.s32.totalorder %s70, %s71
      %p85 = scmp.eq.s32.totalorder %s23, 3
      %p86 = por %p84, %p85
      %p88 = scmp.ne.s32.totalorder %s71, %s87
      %p89 = scmp.eq.s32.totalorder %s23, 0
      %p90 = por %p88, %p89
      %s91 = ssub.s32 %s24, %s36
      %s92 = ssub.s32 %s25, %s32
      %s93 = sor.u32 %s91, %s92
      %p94 = scmp.eq.s32.totalorder %s93, 0
      %s96 = sadd.s32 %s95, 1
      %s97 = scalar_select %p94, %s95, %s96
      %p100 = pneg %p94
      %p101 = scmp.eq.s32.totalorder %s17, 3
      %p102 = por %p100, %p101
      %p103 = scmp.ne.s32.totalorder %s95, %s98
      %p104 = scmp.eq.s32.totalorder %s17, 0
      %p105 = por %p103, %p104
      %p106 = scmp.ne.s32.totalorder %s95, %s98
      %p107 = scmp.eq.s32.totalorder %s22, 3
      %p108 = por %p106, %p107
      %p109 = scmp.ne.s32.totalorder %s98, %s99
      %p110 = scmp.eq.s32.totalorder %s22, 0
      %p111 = por %p109, %p110
      %p112 = scmp.ne.s32.totalorder %s98, %s99
      %p113 = scmp.eq.s32.totalorder %s23, 3
      %p114 = por %p112, %p113
      %p116 = scmp.ne.s32.totalorder %s99, %s115
      %p117 = scmp.eq.s32.totalorder %s23, 0
      %p118 = por %p116, %p117
      %s120 = sadd.s32 %s119, 1
      %p123 = scmp.eq.s32.totalorder %s17, 3
      %p124 = scmp.ne.s32.totalorder %s119, %s121
      %p125 = scmp.eq.s32.totalorder %s17, 0
      %p126 = por %p124, %p125
      %p127 = scmp.ne.s32.totalorder %s119, %s121
      %p128 = scmp.eq.s32.totalorder %s22, 3
      %p129 = por %p127, %p128
      %p130 = scmp.ne.s32.totalorder %s121, %s122
      %p131 = scmp.eq.s32.totalorder %s22, 0
      %p132 = por %p130, %p131
      %p133 = scmp.ne.s32.totalorder %s121, %s122
      %p134 = scmp.eq.s32.totalorder %s23, 3
      %p135 = por %p133, %p134
      %p137 = scmp.ne.s32.totalorder %s122, %s136
      %p138 = scmp.eq.s32.totalorder %s23, 0
      %p139 = por %p137, %p138
      %s140 = ssub.s32 %s24, %s36
      %p141 = scmp.eq.s32.totalorder %s140, 0
      %s143 = sadd.s32 %s142, 1
      %s144 = scalar_select %p141, %s142, %s143
      %p147 = pneg %p141
      %p148 = scmp.eq.s32.totalorder %s17, 3
      %p149 = por %p147, %p148
      %p150 = scmp.ne.s32.totalorder %s142, %s145
      %p151 = scmp.eq.s32.totalorder %s17, 0
      %p152 = por %p150, %p151
      %p153 = scmp.ne.s32.totalorder %s142, %s145
      %p154 = scmp.eq.s32.totalorder %s22, 3
      %p155 = por %p153, %p154
      %p156 = scmp.ne.s32.totalorder %s145, %s146
      %p157 = scmp.eq.s32.totalorder %s22, 0
      %p158 = por %p156, %p157
      %p159 = scmp.ne.s32.totalorder %s145, %s146
      %p160 = scmp.eq.s32.totalorder %s23, 3
      %p161 = por %p159, %p160
      %p163 = scmp.ne.s32.totalorder %s146, %s162
      %p164 = scmp.eq.s32.totalorder %s23, 0
      %p165 = por %p163, %p164
      %s167 = sadd.s32 %s166, 1
      %p170 = scmp.eq.s32.totalorder %s17, 3
      %p171 = scmp.ne.s32.totalorder %s166, %s168
      %p172 = scmp.eq.s32.totalorder %s17, 0
      %p173 = por %p171, %p172
      %p174 = scmp.ne.s32.totalorder %s166, %s168
      %p175 = scmp.eq.s32.totalorder %s22, 3
      %p176 = por %p174, %p175
      %p177 = scmp.ne.s32.totalorder %s168, %s169
      %p178 = scmp.eq.s32.totalorder %s22, 0
      %p179 = por %p177, %p178
      %p180 = scmp.ne.s32.totalorder %s168, %s169
      %p181 = scmp.eq.s32.totalorder %s23, 3
      %p182 = por %p180, %p181
      %p184 = scmp.ne.s32.totalorder %s169, %s183
      %p185 = scmp.eq.s32.totalorder %s23, 0
      %p186 = por %p184, %p185
      %s188 = sadd.s32 %s187, 1
      %p191 = scmp.eq.s32.totalorder %s17, 3
      %p192 = scmp.ne.s32.totalorder %s187, %s189
      %p193 = scmp.eq.s32.totalorder %s17, 0
      %p194 = por %p192, %p193
      %p195 = scmp.ne.s32.totalorder %s187, %s189
      %p196 = scmp.eq.s32.totalorder %s22, 3
      %p197 = por %p195, %p196
      %p198 = scmp.ne.s32.totalorder %s189, %s190
      %p199 = scmp.eq.s32.totalorder %s22, 0
      %p200 = por %p198, %p199
      %p201 = scmp.ne.s32.totalorder %s189, %s190
      %p202 = scmp.eq.s32.totalorder %s23, 3
      %p203 = por %p201, %p202
      %p205 = scmp.ne.s32.totalorder %s190, %s204
      %p206 = scmp.eq.s32.totalorder %s23, 0
      %p207 = por %p205, %p206
      %s209 = sadd.s32 %s208, 1
      %p212 = scmp.eq.s32.totalorder %s17, 3
      %p213 = scmp.ne.s32.totalorder %s208, %s210
      %p214 = scmp.eq.s32.totalorder %s17, 0
      %p215 = por %p213, %p214
      %p216 = scmp.ne.s32.totalorder %s208, %s210
      %p217 = scmp.eq.s32.totalorder %s22, 3
      %p218 = por %p216, %p217
      %p219 = scmp.ne.s32.totalorder %s210, %s211
      %p220 = scmp.eq.s32.totalorder %s22, 0
      %p221 = por %p219, %p220
      %p222 = scmp.ne.s32.totalorder %s210, %s211
      %p223 = scmp.eq.s32.totalorder %s23, 3
      %p224 = por %p222, %p223
      %p226 = scmp.ne.s32.totalorder %s211, %s225
      %p227 = scmp.eq.s32.totalorder %s23, 0
      %p228 = por %p226, %p227
      %s229 = ssub.s32 %s24, %s36
      %s230 = ssub.s32 %s25, %s32
      %s231 = sor.u32 %s229, %s230
      %p232 = scmp.eq.s32.totalorder %s231, 0
      %s234 = sadd.s32 %s233, 1
      %s235 = scalar_select %p232, %s233, %s234
      %p238 = pneg %p232
      %p239 = scmp.eq.s32.totalorder %s17, 3
      %p240 = por %p238, %p239
      %p241 = scmp.ne.s32.totalorder %s233, %s236
      %p242 = scmp.eq.s32.totalorder %s17, 0
      %p243 = por %p241, %p242
      %p244 = scmp.ne.s32.totalorder %s233, %s236
      %p245 = scmp.eq.s32.totalorder %s22, 3
      %p246 = por %p244, %p245
      %p247 = scmp.ne.s32.totalorder %s236, %s237
      %p248 = scmp.eq.s32.totalorder %s22, 0
      %p249 = por %p247, %p248
      %p250 = scmp.ne.s32.totalorder %s236, %s237
      %p251 = scmp.eq.s32.totalorder %s23, 3
      %p252 = por %p250, %p251
      %p254 = scmp.ne.s32.totalorder %s237, %s253
      %p255 = scmp.eq.s32.totalorder %s23, 0
      %p256 = por %p254, %p255
      %p257 = scmp.le.s32.totalorder 1, %s17
      %p258 = scmp.lt.s32.totalorder %s17, 5
      %p259 = pnand %p257, %p258
      %p260 = pneg %p259
      // Predicated region
      $region9: #{tpu_custom_call.1} parent=5 // pred_check
        _
      $region10: #{tpu_custom_call.1} parent=5 // pred_check_branch
        %262 = sbr.rel (%p259) target = $region12
      $region11: #{tpu_custom_call.1} parent=5 // pred_region
        %s263 = ssub.s32 %s17, 1
        // Predicated region
        $region13: #{tpu_custom_call.1} parent=11 // pred_check
          %p264 = pneg %p132
        $region14: #{tpu_custom_call.1} parent=11 // pred_check_branch
          %266 = sbr.rel (%p264) target = $region16
        $region15: #{tpu_custom_call.1} parent=11 // pred_region
          _
        $region16: #{tpu_custom_call.1} parent=11 // pred_fallthru
          _
        // Predicated region
        $region17: #{tpu_custom_call.1} parent=11 // pred_check
          %p267 = pneg %p179
        $region18: #{tpu_custom_call.1} parent=11 // pred_check_branch
          %269 = sbr.rel (%p267) target = $region20
        $region19: #{tpu_custom_call.1} parent=11 // pred_region
          _
        $region20: #{tpu_custom_call.1} parent=11 // pred_fallthru
          _
        // Predicated region
        $region21: #{tpu_custom_call.1} parent=11 // pred_check
          %p270 = pneg %p200
        $region22: #{tpu_custom_call.1} parent=11 // pred_check_branch
          %272 = sbr.rel (%p270) target = $region24
        $region23: #{tpu_custom_call.1} parent=11 // pred_region
          _
        $region24: #{tpu_custom_call.1} parent=11 // pred_fallthru
          _
        // Predicated region
        $region25: #{tpu_custom_call.1} parent=11 // pred_check
          %p273 = pneg %p221
        $region26: #{tpu_custom_call.1} parent=11 // pred_check_branch
          %275 = sbr.rel (%p273) target = $region28
        $region27: #{tpu_custom_call.1} parent=11 // pred_region
          _
        $region28: #{tpu_custom_call.1} parent=11 // pred_fallthru
          _
      $region12: #{tpu_custom_call.1} parent=5 // pred_fallthru
        _
      %p276 = scmp.lt.s32.totalorder %s17, 4
      // Predicated region
      $region29: #{tpu_custom_call.1} parent=5 // pred_check
        %p277 = pneg %p276
      $region30: #{tpu_custom_call.1} parent=5 // pred_check_branch
        %279 = sbr.rel (%p277) target = $region32
      $region31: #{tpu_custom_call.1} parent=5 // pred_region
        // Predicated region
        $region33: #{tpu_custom_call.1} parent=31 // pred_check
          %p280 = pneg %p51
        $region34: #{tpu_custom_call.1} parent=31 // pred_check_branch
          %282 = sbr.rel (%p280) target = $region36
        $region35: #{tpu_custom_call.1} parent=31 // pred_region
          %p283 = scmp.lt.s32.totalorder %s24, 1
          %s284 = scalar_select %p283, %s24, 1
          %p285 = scmp.lt.s32.totalorder %s25, 1
          %s286 = scalar_select %p285, %s25, 1
          %s287 = smul.addr %s284, 2
          %s288 = sadd.s32 %s286, %s287
          %s289 = smul.addr %s288, 4
          %s290 = scalar_lea.vmem %s0, %s289
        $region36: #{tpu_custom_call.1} parent=31 // pred_fallthru
          _
        // Predicated region
        $region37: #{tpu_custom_call.1} parent=31 // pred_check
          %p291 = pneg %p77
        $region38: #{tpu_custom_call.1} parent=31 // pred_check_branch
          %293 = sbr.rel (%p291) target = $region40
        $region39: #{tpu_custom_call.1} parent=31 // pred_region
          %p294 = scmp.lt.s32.totalorder %s24, 1
          %s295 = scalar_select %p294, %s24, 1
          %s296 = smul.addr %s295, 8
          %s297 = scalar_lea.vmem %s1, %s296
        $region40: #{tpu_custom_call.1} parent=31 // pred_fallthru
          _
        // Predicated region
        $region41: #{tpu_custom_call.1} parent=31 // pred_check
          %p298 = pneg %p105
        $region42: #{tpu_custom_call.1} parent=31 // pred_check_branch
          %300 = sbr.rel (%p298) target = $region44
        $region43: #{tpu_custom_call.1} parent=31 // pred_region
          %s301 = sand.u32 %s95, 1
          %s302 = sand.u32 %s95, 1
          %s303 = smul.addr %s302, 8
          %s304 = scalar_lea.vmem [#allocation2], %s303
          %s305 = smul.addr %s24, 4
          %s306 = sadd.s32 %s25, %s305
          %s307 = smul.addr %s306, 4
          %s308 = scalar_lea.vmem %s2, %s307
          // Predicated region
          $region45: #{tpu_custom_call.1} parent=43 // pred_check
            _
          $region46: #{tpu_custom_call.1} parent=43 // pred_check_branch
            %310 = sbr.rel (0) target = $region48
          $region47: #{tpu_custom_call.1} parent=43 // pred_region
            // Predicated region
            $region49: #{tpu_custom_call.1} parent=47 // pred_check
              _
            $region50: #{tpu_custom_call.1} parent=47 // pred_check_branch
              %312 = sbr.rel target = $region52
            $region51: #{tpu_custom_call.1} parent=47 // pred_region
              // Predicated region
              $region64: #{tpu_custom_call.1} parent=51 // pred_check
                _
              $region65: #{tpu_custom_call.1} parent=51 // pred_check_branch
                %329 = sbr.rel (0) target = $region67
              $region66: #{tpu_custom_call.1} parent=51 // pred_region
                loop: start=0, step=1, limit=1
                $region68: #{tpu_custom_call.1} parent=66 // loop_pre_header
                  _
                $region69: #{tpu_custom_call.1} parent=66 // loop_header
                  %s331 = sphi 0, %s335
                  %p332 = scmp.ge.s32.totalorder %s331, 1
                  %s336 = sphi %s308, %s308
                  %s337 = sphi %s304, %s304
                $region70: #{tpu_custom_call.1} parent=66 // loop_header_branch
                  %334 = sbr.rel (%p332) target = $region74
                $region71: #{tpu_custom_call.1} parent=66 // loop_body
                  _
                $region72: #{tpu_custom_call.1} parent=66 // loop_footer
                  %s335 = sadd.s32 1, %s331
                $region73: #{tpu_custom_call.1} parent=66 // loop_footer_branch
                  %330 = sbr.rel target = $region69
                $region74: #{tpu_custom_call.1} parent=66 // loop_exit
                  _
                loop: start=0, step=1, limit=1
                $region75: #{tpu_custom_call.1} parent=66 // loop_pre_header
                  _
                $region76: #{tpu_custom_call.1} parent=66 // loop_header
                  %s340 = sphi 0, %s344
                  %p341 = scmp.ge.s32.totalorder %s340, 1
                  %s345 = sphi %s308, %s308
                  %s346 = sphi %s304, %s304
                $region77: #{tpu_custom_call.1} parent=66 // loop_header_branch
                  %343 = sbr.rel (%p341) target = $region81
                $region78: #{tpu_custom_call.1} parent=66 // loop_body
                  %v347 = vld [vmem:[%s345] sm:$0xf]
                  %348 = vst [vmem:[%s346] sm:$0xf] %v347
                  %v349 = vld [vmem:[%s345 + $0x8] sm:$0xf]
                  %350 = vst [vmem:[%s346 + $0x4] sm:$0xf] %v349
                $region79: #{tpu_custom_call.1} parent=66 // loop_footer
                  %s344 = sadd.s32 1, %s340
                $region80: #{tpu_custom_call.1} parent=66 // loop_footer_branch
                  %339 = sbr.rel target = $region76
                $region81: #{tpu_custom_call.1} parent=66 // loop_exit
                  _
              $region67: #{tpu_custom_call.1} parent=51 // pred_fallthru
                _
            $region52: #{tpu_custom_call.1} parent=47 // pred_fallthru
              _
            // Predicated region
            $region53: #{tpu_custom_call.1} parent=47 // pred_check
              _
            $region54: #{tpu_custom_call.1} parent=47 // pred_check_branch
              %314 = sbr.rel (0) target = $region56
            $region55: #{tpu_custom_call.1} parent=47 // pred_region
              loop: start=0, step=1, limit=1
              $region57: #{tpu_custom_call.1} parent=55 // loop_pre_header
                _
              $region58: #{tpu_custom_call.1} parent=55 // loop_header
                %s317 = sphi 0, %s321
                %p318 = scmp.ge.s32.totalorder %s317, 1
                %s322 = sphi %s308, %s308
                %s323 = sphi %s304, %s304
              $region59: #{tpu_custom_call.1} parent=55 // loop_header_branch
                %320 = sbr.rel (%p318) target = $region63
              $region60: #{tpu_custom_call.1} parent=55 // loop_body
                %v324 = vld [vmem:[%s322] sm:$0xf]
                %325 = vst [vmem:[%s323] sm:$0xf] %v324
                %v326 = vld [vmem:[%s322 + $0x8] sm:$0xf]
                %327 = vst [vmem:[%s323 + $0x4] sm:$0xf] %v326
              $region61: #{tpu_custom_call.1} parent=55 // loop_footer
                %s321 = sadd.s32 1, %s317
              $region62: #{tpu_custom_call.1} parent=55 // loop_footer_branch
                %316 = sbr.rel target = $region58
              $region63: #{tpu_custom_call.1} parent=55 // loop_exit
                _
            $region56: #{tpu_custom_call.1} parent=47 // pred_fallthru
              _
          $region48: #{tpu_custom_call.1} parent=43 // pred_fallthru
            _
          %351 = vnop
        $region44: #{tpu_custom_call.1} parent=31 // pred_fallthru
          _
        // Predicated region
        $region82: #{tpu_custom_call.1} parent=31 // pred_check
          %p352 = pneg %p152
        $region83: #{tpu_custom_call.1} parent=31 // pred_check_branch
          %354 = sbr.rel (%p352) target = $region85
        $region84: #{tpu_custom_call.1} parent=31 // pred_region
          %p355 = scmp.lt.s32.totalorder %s24, 1
          %s356 = scalar_select %p355, %s24, 1
          %s357 = smul.addr %s356, 4
          %s358 = smul.addr %s357, 4
          %s359 = scalar_lea.vmem %s4, %s358
        $region85: #{tpu_custom_call.1} parent=31 // pred_fallthru
          _
      $region32: #{tpu_custom_call.1} parent=5 // pred_fallthru
        _
      %p360 = scmp.le.s32.totalorder 1, %s17
      %p361 = scmp.lt.s32.totalorder %s17, 5
      %p362 = pnand %p360, %p361
      %p363 = pneg %p362
      // Predicated region
      $region86: #{tpu_custom_call.1} parent=5 // pred_check
        _
      $region87: #{tpu_custom_call.1} parent=5 // pred_check_branch
        %365 = sbr.rel (%p362) target = $region89
      $region88: #{tpu_custom_call.1} parent=5 // pred_region
        %s366 = ssub.s32 %s17, 1
        %s367 = sand.u32 %s98, 1
        %s368 = sand.u32 %s98, 1
        %s369 = smul.addr %s368, 8
        %s370 = scalar_lea.vmem [#allocation2], %s369
        // Predicated region
        $region90: #{tpu_custom_call.1} parent=88 // pred_check
          %p371 = pneg %p111
        $region91: #{tpu_custom_call.1} parent=88 // pred_check_branch
          %373 = sbr.rel (%p371) target = $region93
        $region92: #{tpu_custom_call.1} parent=88 // pred_region
          _
        $region93: #{tpu_custom_call.1} parent=88 // pred_fallthru
          _
        %p374 = scmp.lt.s32.totalorder %s26, 1
        %s375 = scalar_select %p374, %s26, 1
        %p376 = scmp.lt.s32.totalorder %s27, 1
        %s377 = scalar_select %p376, %s27, 1
        %s378 = smul.addr %s375, 2
        %s379 = sadd.s32 %s377, %s378
        %s380 = smul.addr %s379, 4
        %s381 = scalar_lea.vmem %s0, %s380
        %p382 = pneg %p57
        %p383 = pneg %p54
        %p384 = scmp.lt.s32.totalorder %s26, 1
        %s385 = scalar_select %p384, %s26, 1
        %s386 = smul.addr %s385, 8
        %s387 = scalar_lea.vmem %s1, %s386
        %p388 = pneg %p83
        %p389 = pneg %p80
        %s390 = sand.u32 %s98, 1
        %s391 = sand.u32 %s98, 1
        %s392 = smul.addr %s391, 8
        %s393 = scalar_lea.vmem [#allocation2], %s392
        %p394 = pneg %p111
        %p395 = pneg %p108
        %p396 = pneg %p132
        %p397 = pneg %p129
        %p398 = scmp.lt.s32.totalorder %s26, 1
        %s399 = scalar_select %p398, %s26, 1
        %s400 = smul.addr %s399, 4
        %s401 = smul.addr %s400, 4
        %s402 = scalar_lea.vmem %s4, %s401
        %p403 = pneg %p158
        %p404 = pneg %p155
        %p405 = pneg %p179
        %p406 = pneg %p176
        %p407 = pneg %p200
        %p408 = pneg %p197
        %p409 = pneg %p221
        %p410 = pneg %p218
        %p411 = pneg %p249
        %p412 = pneg %p246
        %s413 = sand.u32 %s236, 1
        %s414 = scalar_lea.sflag [#allocation4], %s413
        %s415 = sand.u32 %s236, 1
        %s416 = smul.addr %s415, 16
        %s417 = scalar_lea.vmem [#allocation3], %s416
        %p418 = scmp.lt.s32.totalorder %s26, 1
        %s419 = scalar_select %p418, %s26, 1
        %p420 = scmp.lt.s32.totalorder %s27, 1
        %s421 = scalar_select %p420, %s27, 1
        %s422 = smul.addr %s419, 2
        %s423 = sadd.s32 %s421, %s422
        %s424 = smul.addr %s423, 4
        %s425 = scalar_lea.vmem %s0, %s424
        %p426 = scmp.lt.s32.totalorder %s26, 1
        %s427 = scalar_select %p426, %s26, 1
        %s428 = smul.addr %s427, 8
        %s429 = scalar_lea.vmem %s1, %s428
        %p430 = scmp.lt.s32.totalorder %s26, 1
        %s431 = scalar_select %p430, %s26, 1
        %s432 = smul.addr %s431, 4
        %s433 = smul.addr %s432, 4
        %s434 = scalar_lea.vmem %s4, %s433
        %v436 = vld [vmem:[%s425] sm:$0x7]
        %v437 = vld [vmem:[%s429] sm:$0xff]
        %439 = vset.pattern.permute.xlu0 0
        %440 = vperm.xlu0 %439, %v437
        %v441 = vpop.permute.xlu0 %440
        %v443 = vlaneseq
        %v444 = vshrl.u32 %v443, 7
        %v445 = vsub.s32 0, %v444
        %v446 = vrot.slane %v436, %v445
        %v447 = vsub.f32 %v441, %v446
        %v448 = vmul.f32 %v447, %v447
        %449 = vset.pattern.permute.xlu0 1
        %450 = vperm.xlu0 %449, %v437
        %v451 = vpop.permute.xlu0 %450
        %v453 = vlaneseq
        %v454 = vshrl.u32 %v453, 7
        %v455 = vsub.s32 1, %v454
        %v456 = vrot.slane %v436, %v455
        %v457 = vsub.f32 %v451, %v456
        %v458 = vmul.f32 %v457, %v457
        %v459 = vadd.f32 %v448, %v458
        %460 = vset.pattern.permute.xlu0 2
        %461 = vperm.xlu0 %460, %v437
        %v462 = vpop.permute.xlu0 %461
        %v464 = vlaneseq
        %v465 = vshrl.u32 %v464, 7
        %v466 = vsub.s32 2, %v465
        %v467 = vrot.slane %v436, %v466
        %v468 = vsub.f32 %v462, %v467
        %v469 = vmul.f32 %v468, %v468
        %v470 = vadd.f32 %v459, %v469
        %v471 = vlaneseq
        %v472 = vshrl.u32 %v471, 7
        %v473 = vmax.f32 %v470, 1e-12
        %v475 = vand.u32 %v473, 4294967288
        %v476 = vor.u32 %v475, %v472
        %v478 = vrot.slane %v476, 4
        %v479 = vmin.f32 %v476, %v478
        %v480 = vrot.slane %v479, 2
        %v481 = vmin.f32 %v479, %v480
        %v482 = vrot.slane %v481, 1
        %v483 = vmin.f32 %v481, %v482
        %v485 = vand.u32 %v483, 7
        %v486 = vand.u32 %v483, 4294967288
        %vm488 = vcmp.eq.s32.totalorder %v472, %v485
        %v489 = vadd.f32 %v486, 1e-08
        %v490 = vrcp.pop %v489
        %v491 = vsel %vm488, 1, 0
        %v492 = vcvt.s32.f32 %v491
        %v493 = vmul.f32 %v492, %v490
        %v494 = vadd.f32 %v493, 0.0
        %v495 = vadd.f32 %v490, 0.0
        %v496 = vsel %vm488, 3e+38, %v476
        %v497 = vrot.slane %v496, 4
        %v498 = vmin.f32 %v496, %v497
        %v499 = vrot.slane %v498, 2
        %v500 = vmin.f32 %v498, %v499
        %v501 = vrot.slane %v500, 1
        %v502 = vmin.f32 %v500, %v501
        %v504 = vand.u32 %v502, 7
        %v505 = vand.u32 %v502, 4294967288
        %vm507 = vcmp.eq.s32.totalorder %v472, %v504
        %v508 = vadd.f32 %v505, 1e-08
        %v509 = vrcp.pop %v508
        %v510 = vsel %vm507, 1, 0
        %v511 = vcvt.s32.f32 %v510
        %v512 = vmul.f32 %v511, %v509
        %v513 = vadd.f32 %v494, %v512
        %v514 = vadd.f32 %v495, %v509
        %v515 = vsel %vm507, 3e+38, %v496
        %v516 = vrot.slane %v515, 4
        %v517 = vmin.f32 %v515, %v516
        %v518 = vrot.slane %v517, 2
        %v519 = vmin.f32 %v517, %v518
        %v520 = vrot.slane %v519, 1
        %v521 = vmin.f32 %v519, %v520
        %v523 = vand.u32 %v521, 7
        %v524 = vand.u32 %v521, 4294967288
        %vm526 = vcmp.eq.s32.totalorder %v472, %v523
        %v527 = vadd.f32 %v524, 1e-08
        %v528 = vrcp.pop %v527
        %v529 = vsel %vm526, 1, 0
        %v530 = vcvt.s32.f32 %v529
        %v531 = vmul.f32 %v530, %v528
        %v532 = vadd.f32 %v513, %v531
        %v533 = vadd.f32 %v514, %v528
        %v534 = vrcp.pop %v533
        %v535 = vmul.f32 %v532, %v534
        %v536 = vpack.c.bf16 %v535, %v535
        %v537 = vld [vmem:[%s3] sm:$0xf]
        %v538 = vld [vmem:[%s3 + $0x4] sm:$0xf]
        %v539 = vld [vmem:[%s3 + $0x8] sm:$0xf]
        %v540 = vld [vmem:[%s3 + $0xc] sm:$0xf]
        %v541 = vld [vmem:[%s370] sm:$0xf]
        %v542 = vld [vmem:[%s370 + $0x4] sm:$0xf]
        %v543 = vld [vmem:[%s434] sm:$0xf]
        %v544 = vld [vmem:[%s434 + $0x4] sm:$0xf]
        %v545 = vld [vmem:[%s434 + $0x8] sm:$0xf]
        %v546 = vld [vmem:[%s434 + $0xc] sm:$0xf]
        %v551 = vunpack.c.l.b16 %v543
        %v552 = vunpack.c.l.b16 %v544
        %v553 = vunpack.c.l.b16 %v545
        %v554 = vunpack.c.l.b16 %v546
        %v555 = vpack.c.b16 %v552, %v551
        %v556 = vpack.c.b16 %v554, %v553
        %vm557 = vcmask 64512
        %v559 = vsel %vm557, %v555, 0
        %v562 = vsel %vm557, %v556, 0
        %vm564 = vcmask 1043456
        %v566 = vsel %vm564, %v536, 0
        %568 = vmatprep.subr.bf16.mxu0 0
        %569 = vmatpush1.bf16.msra.mxu0 %v566
        %570 = vmatprep.subr.bf16.mxu0 0
        %571 = vmatpush1.bf16.msra.mxu0 0
        %572 = vmatprep.subr.bf16.mxu0 0
        %573 = vmatpush1.bf16.msra.mxu0 0
        %574 = vmatprep.subr.bf16.mxu0 0
        %575 = vmatpush1.bf16.msra.mxu0 0
        %576 = vmatprep.subr.bf16.mxu0 0
        %577 = vmatpush1.bf16.msra.mxu0 0
        %578 = vmatprep.subr.bf16.mxu0 0
        %579 = vmatpush1.bf16.msra.mxu0 0
        %580 = vmatprep.subr.bf16.mxu0 0
        %581 = vmatpush1.bf16.msra.mxu0 0
        %582 = vmatprep.subr.bf16.mxu0 0
        %583 = vmatpush1.bf16.msra.mxu0 0
        %584 = vmatprep.subr.bf16.mxu0 0
        %585 = vmatpush1.bf16.msra.mxu0 0
        %586 = vmatprep.subr.bf16.mxu0 0
        %587 = vmatpush1.bf16.msra.mxu0 0
        %588 = vmatprep.subr.bf16.mxu0 0
        %589 = vmatpush1.bf16.msra.mxu0 0
        %590 = vmatprep.subr.bf16.mxu0 0
        %591 = vmatpush1.bf16.msra.mxu0 0
        %592 = vmatprep.subr.bf16.mxu0 0
        %593 = vmatpush1.bf16.msra.mxu0 0
        %594 = vmatprep.subr.bf16.mxu0 0
        %595 = vmatpush1.bf16.msra.mxu0 0
        %596 = vmatprep.subr.bf16.mxu0 0
        %597 = vmatpush1.bf16.msra.mxu0 0
        %598 = vmatprep.subr.bf16.mxu0 0
        %599 = vmatpush1.bf16.msra.mxu0 0
        %600 = vmatprep.mubr.bf16.mxu0 0
        %601 = vmatmul.mubr.bf16.gmra.mrb[0].mxu0 %v559
        %v602 = vpop.f32.mrb[0].mxu0
        %v603 = vadd.f32 0.0, %v602
        %v604 = vpop.f32.mrb[0].mxu0
        %v605 = vpop.f32.mrb[0].mxu0
        %v606 = vadd.f32 0.0, %v605
        %v607 = vpop.f32.mrb[0].mxu0
        %608 = vmatprep.mubr.bf16.mxu0 0
        %609 = vmatmul.mubr.bf16.gmra.mrb[0].mxu0 %v562
        %v610 = vpop.f32.mrb[0].mxu0
        %v611 = vadd.f32 0.0, %v610
        %v612 = vpop.f32.mrb[0].mxu0
        %v613 = vpop.f32.mrb[0].mxu0
        %v614 = vadd.f32 0.0, %v613
        %v615 = vpop.f32.mrb[0].mxu0
        %616 = vdwg.mxu0
        %v621 = vunpack.c.l.b16 %v537
        %v622 = vunpack.c.l.b16 %v538
        %v623 = vunpack.c.l.b16 %v539
        %v624 = vunpack.c.l.b16 %v540
        %v625 = vpack.c.b16 %v622, %v621
        %v626 = vpack.c.b16 %v624, %v623
        %v629 = vunpack.c.l.b16 %v541
        %v630 = vunpack.c.l.b16 %v542
        %v631 = vpack.c.b16 %v630, %v629
        %vm633 = vcmask 130048
        %v635 = vsel %vm633, %v625, 0
        %v638 = vsel %vm633, %v626, 0
        %640 = vmatprep.subr.bf16.mxu0 0
        %641 = vmatpush1.bf16.msra.mxu0 %v631
        %642 = vmatprep.subr.bf16.mxu0 0
        %643 = vmatpush1.bf16.msra.mxu0 0
        %644 = vmatprep.subr.bf16.mxu0 0
        %645 = vmatpush1.bf16.msra.mxu0 0
        %646 = vmatprep.subr.bf16.mxu0 0
        %647 = vmatpush1.bf16.msra.mxu0 0
        %648 = vmatprep.subr.bf16.mxu0 0
        %649 = vmatpush1.bf16.msra.mxu0 0
        %650 = vmatprep.subr.bf16.mxu0 0
        %651 = vmatpush1.bf16.msra.mxu0 0
        %652 = vmatprep.subr.bf16.mxu0 0
        %653 = vmatpush1.bf16.msra.mxu0 0
        %654 = vmatprep.subr.bf16.mxu0 0
        %655 = vmatpush1.bf16.msra.mxu0 0
        %656 = vmatprep.subr.bf16.mxu0 0
        %657 = vmatpush1.bf16.msra.mxu0 0
        %658 = vmatprep.subr.bf16.mxu0 0
        %659 = vmatpush1.bf16.msra.mxu0 0
        %660 = vmatprep.subr.bf16.mxu0 0
        %661 = vmatpush1.bf16.msra.mxu0 0
        %662 = vmatprep.subr.bf16.mxu0 0
        %663 = vmatpush1.bf16.msra.mxu0 0
        %664 = vmatprep.subr.bf16.mxu0 0
        %665 = vmatpush1.bf16.msra.mxu0 0
        %666 = vmatprep.subr.bf16.mxu0 0
        %667 = vmatpush1.bf16.msra.mxu0 0
        %668 = vmatprep.subr.bf16.mxu0 0
        %669 = vmatpush1.bf16.msra.mxu0 0
        %670 = vmatprep.subr.bf16.mxu0 0
        %671 = vmatpush1.bf16.msra.mxu0 0
        %672 = vmatprep.mubr.bf16.mxu0 0
        %673 = vmatmul.mubr.bf16.gmra.mrb[0].mxu0 %v635
        %v674 = vpop.f32.mrb[0].mxu0
        %v675 = vadd.f32 %v603, %v674
        %v676 = vpop.f32.mrb[0].mxu0
        %v677 = vpop.f32.mrb[0].mxu0
        %v678 = vadd.f32 %v606, %v677
        %v679 = vpop.f32.mrb[0].mxu0
        %680 = vmatprep.mubr.bf16.mxu0 0
        %681 = vmatmul.mubr.bf16.gmra.mrb[0].mxu0 %v638
        %v682 = vpop.f32.mrb[0].mxu0
        %v683 = vadd.f32 %v611, %v682
        %v684 = vpop.f32.mrb[0].mxu0
        %v685 = vpop.f32.mrb[0].mxu0
        %v686 = vadd.f32 %v614, %v685
        %v687 = vpop.f32.mrb[0].mxu0
        %688 = vdwg.mxu0
        %v689 = vld [vmem:[%s5] sm:$0xff]
        %v690 = vld [vmem:[%s5 + $0x8] sm:$0xff]
        %v691 = vld [vmem:[%s5 + $0x10] sm:$0xff]
        %v692 = vld [vmem:[%s5 + $0x18] sm:$0xff]
        %694 = vset.pattern.permute.xlu0 0
        %695 = vperm.xlu0 %694, %v689
        %v696 = vpop.permute.xlu0 %695
        %699 = vset.pattern.permute.xlu0 0
        %700 = vperm.xlu0 %699, %v690
        %v701 = vpop.permute.xlu0 %700
        %704 = vset.pattern.permute.xlu0 0
        %705 = vperm.xlu0 %704, %v691
        %v706 = vpop.permute.xlu0 %705
        %709 = vset.pattern.permute.xlu0 0
        %710 = vperm.xlu0 %709, %v692
        %v711 = vpop.permute.xlu0 %710
        %v713 = vadd.f32 %v675, %v696
        %v714 = vadd.f32 %v678, %v701
        %v715 = vadd.f32 %v683, %v706
        %v716 = vadd.f32 %v686, %v711
        %v717 = vmax.f32 %v713, 0.0
        %v718 = vmax.f32 %v714, 0.0
        %v719 = vmax.f32 %v715, 0.0
        %v720 = vmax.f32 %v716, 0.0
        %v721 = vld [vmem:[%s6] sm:$0xf]
        %v722 = vld [vmem:[%s6 + $0x4] sm:$0xf]
        %v723 = vld [vmem:[%s7] sm:$0xff]
        %v724 = vld [vmem:[%s7 + $0x8] sm:$0xff]
        %v725 = vpack.c.bf16 %v718, %v717
        %v726 = vpack.c.bf16 %v720, %v719
        %728 = vset.pattern.permute.xlu0 0
        %729 = vperm.xlu0 %728, %v723
        %v730 = vpop.permute.xlu0 %729
        %733 = vset.pattern.permute.xlu0 0
        %734 = vperm.xlu0 %733, %v724
        %v735 = vpop.permute.xlu0 %734
        %v739 = vunpack.c.l.b16 %v721
        %v740 = vunpack.c.l.b16 %v722
        %v741 = vpack.c.b16 %v740, %v739
        %vm742 = vcmask 261120
        %v744 = vsel %vm742, %v741, 0
        %746 = vmatprep.subr.bf16.mxu0 0
        %747 = vmatpush1.bf16.msra.mxu0 %v725
        %748 = vmatprep.subr.bf16.mxu0 0
        %749 = vmatpush1.bf16.msra.mxu0 %v726
        %750 = vmatprep.subr.bf16.mxu0 0
        %751 = vmatpush1.bf16.msra.mxu0 0
        %752 = vmatprep.subr.bf16.mxu0 0
        %753 = vmatpush1.bf16.msra.mxu0 0
        %754 = vmatprep.subr.bf16.mxu0 0
        %755 = vmatpush1.bf16.msra.mxu0 0
        %756 = vmatprep.subr.bf16.mxu0 0
        %757 = vmatpush1.bf16.msra.mxu0 0
        %758 = vmatprep.subr.bf16.mxu0 0
        %759 = vmatpush1.bf16.msra.mxu0 0
        %760 = vmatprep.subr.bf16.mxu0 0
        %761 = vmatpush1.bf16.msra.mxu0 0
        %762 = vmatprep.subr.bf16.mxu0 0
        %763 = vmatpush1.bf16.msra.mxu0 0
        %764 = vmatprep.subr.bf16.mxu0 0
        %765 = vmatpush1.bf16.msra.mxu0 0
        %766 = vmatprep.subr.bf16.mxu0 0
        %767 = vmatpush1.bf16.msra.mxu0 0
        %768 = vmatprep.subr.bf16.mxu0 0
        %769 = vmatpush1.bf16.msra.mxu0 0
        %770 = vmatprep.subr.bf16.mxu0 0
        %771 = vmatpush1.bf16.msra.mxu0 0
        %772 = vmatprep.subr.bf16.mxu0 0
        %773 = vmatpush1.bf16.msra.mxu0 0
        %774 = vmatprep.subr.bf16.mxu0 0
        %775 = vmatpush1.bf16.msra.mxu0 0
        %776 = vmatprep.subr.bf16.mxu0 0
        %777 = vmatpush1.bf16.msra.mxu0 0
        %778 = vmatprep.mubr.bf16.mxu0 0
        %779 = vmatmul.mubr.bf16.gmra.mrb[0].mxu0 %v744
        %v780 = vpop.f32.mrb[0].mxu0
        %v781 = vadd.f32 %v730, %v780
        %v782 = vpop.f32.mrb[0].mxu0
        %v783 = vpop.f32.mrb[0].mxu0
        %v784 = vadd.f32 %v735, %v783
        %v785 = vpop.f32.mrb[0].mxu0
        %786 = vdwg.mxu0
        %v787 = vmax.f32 %v781, 0.0
        %v788 = vmax.f32 %v784, 0.0
        %789 = vst [vmem:[%s417] sm:$0xff] %v787
        %790 = vst [vmem:[%s417 + $0x8] sm:$0xff] %v788
        %s791 = sand.u32 %s236, 1
        %s792 = scalar_lea.sflag [#allocation4], %s791
        %s793 = sand.u32 %s236, 1
        %s794 = smul.addr %s793, 16
        %s795 = scalar_lea.vmem [#allocation3], %s794
        // Predicated region
        $region94: #{tpu_custom_call.1} parent=88 // pred_check
          %p796 = pneg %p246
        $region95: #{tpu_custom_call.1} parent=88 // pred_check_branch
          %798 = sbr.rel (%p796) target = $region97
        $region96: #{tpu_custom_call.1} parent=88 // pred_region
          %s800 = ssub.s32 256, 256
          %801 = vsyncadd %s792, %s800
          %s802 = smul.addr %s26, 4
          %s803 = sadd.s32 %s27, %s802
          %s804 = smul.addr %s803, 128
          %s805 = scalar_lea.hbm %s8, %s804
          %s806 = sshll.u32 %s795, 4
          %s807 = int_to_ptr.vmem [resolvable:$true] %s806
          %812 = dma.vmem_to_hbm [thread:$0]  %s807, 256, %s805, %s792, 128, 256, 8
        $region97: #{tpu_custom_call.1} parent=88 // pred_fallthru
          _
      $region89: #{tpu_custom_call.1} parent=5 // pred_fallthru
        _
      %p813 = scmp.le.s32.totalorder 2, %s17
      // Predicated region
      $region98: #{tpu_custom_call.1} parent=5 // pred_check
        %p814 = pneg %p813
      $region99: #{tpu_custom_call.1} parent=5 // pred_check_branch
        %816 = sbr.rel (%p814) target = $region101
      $region100: #{tpu_custom_call.1} parent=5 // pred_region
        %s817 = ssub.s32 %s17, 2
        // Predicated region
        $region102: #{tpu_custom_call.1} parent=100 // pred_check
          %p818 = pneg %p252
        $region103: #{tpu_custom_call.1} parent=100 // pred_check_branch
          %820 = sbr.rel (%p818) target = $region105
        $region104: #{tpu_custom_call.1} parent=100 // pred_region
          %s821 = sand.u32 %s237, 1
          %s822 = scalar_lea.sflag [#allocation4], %s821
          %s823 = sand.u32 %s237, 1
          %s824 = smul.addr %s823, 16
          %s825 = scalar_lea.vmem [#allocation3], %s824
          %826 = dma.done %s822, 256
        $region105: #{tpu_custom_call.1} parent=100 // pred_fallthru
          _
      $region101: #{tpu_custom_call.1} parent=5 // pred_fallthru
        _
    $region6: #{tpu_custom_call.1} parent=1 // loop_footer
      %s21 = sadd.s32 1, %s17
    $region7: #{tpu_custom_call.1} parent=1 // loop_footer_branch
      %16 = sbr.rel target = $region3
    $region8: #{tpu_custom_call.1} parent=1 // loop_exit
      _
    %827 = vsyncpa [#allocation4], 1
    %s828 = scalar_lea.sflag [#allocation4], 1
    %829 = vsyncpa %s828, 1

</llo_original>
